<compile_context>
chip_gen: v7x
topology: tpu7x:2x2x1
jax: 0.10.0
libtpu: 0.0.40
codegen_flags: <defaults>
</compile_context>

<pallas_src>
import functools

import jax
import jax.numpy as jnp
from jax.experimental import pallas as pl
from jax.experimental.pallas import tpu as pltpu


def _round_up(x, m):
    return ((x + m - 1) // m) * m


def _scores_kernel(ab_ref, ent_ref, scores_ref):
    # (B, 2R) x (ent_tile, 2R) -> (B, ent_tile), contracting the fused 2R axis
    # of the UN-split entity tile.  f32 accumulation on the MXU.
    dn = (((1,), (1,)), ((), ()))
    scores_ref[...] = jax.lax.dot_general(
        ab_ref[...], ent_ref[...], dn, preferred_element_type=jnp.float32)


@functools.partial(jax.jit,
                   static_argnames=("rank", "ent_tile", "no_time_emb"))
def tcomplex_forward(x, ent_emb, rel_emb, ts_emb, ent_emb_stream=None, *,
                     rank, ent_tile=None, no_time_emb=False):
    """Mirrors TComplExModel.forward.

    x:              (B, 4) int32  columns = (head, relation, tail, timestamp)
    ent_emb:        (num_ent, 2*rank) f32  (gathers / lhs / rhs)
    rel_emb:        (num_rel, 2*rank) f32
    ts_emb:         (num_ts,  2*rank) f32
    ent_emb_stream: optional low-precision (e.g. bf16) copy of ent_emb used
                    only for the full-table scan; create it once outside this
                    jitted function.  Defaults to ent_emb.
    Returns scores (B, num_ent) and the 'n3' factor triple + lambda3.
    """
    B = x.shape[0]
    num_ent = ent_emb.shape[0]
    two_r = 2 * rank

    if ent_emb_stream is None:
        ent_emb_stream = ent_emb
    stream_dtype = ent_emb_stream.dtype
    itemsize = jnp.dtype(stream_dtype).itemsize

    # ---- glue: gathers + grid-invariant complex products (O(B*rank)) ----
    lhs = ent_emb[x[:, 0]]
    rel = rel_emb[x[:, 1]]
    rhs = ent_emb[x[:, 2]]
    tim = ts_emb[x[:, 3]]

    lre, lim = lhs[:, :rank], lhs[:, rank:]
    rre, rim = rel[:, :rank], rel[:, rank:]
    hre, him = rhs[:, :rank], rhs[:, rank:]
    tre, tmi = tim[:, :rank], tim[:, rank:]

    # full_rel = rel * time  (complex product)
    fr_re = rre * tre - rim * tmi
    fr_im = rim * tre + rre * tmi
    # lhs * full_rel (complex product), fused into one (B, 2R) operand so the
    # kernel does a single K = 2*rank contraction:  [a|b] @ ent_emb.T
    a = lre * fr_re - lim * fr_im
    b = lim * fr_re + lre * fr_im
    ab = jnp.concatenate([a, b], axis=-1).astype(stream_dtype)   # (B, 2*rank)

    # n3 factors: tiny, stay in plain JAX f32.
    n3 = (jnp.sqrt(lre ** 2 + lim ** 2),
          jnp.sqrt(fr_re ** 2 + fr_im ** 2),
          jnp.sqrt(hre ** 2 + him ** 2))

    # ---- pad B only (tiny); never pad / copy the entity table ----
    b_mult = 16 if itemsize <= 2 else 8          # bf16 sublane packing
    b_pad = max(_round_up(B, b_mult), b_mult)
    if b_pad != B:
        ab = jnp.pad(ab, ((0, b_pad - B), (0, 0)))

    # ---- entity tile selection ----
    # 8192 bf16 rows -> 4 MiB slab (8 MiB double-buffered); 4096 f32 rows ->
    # same footprint.  Fits v5e's 16 MiB scoped-VMEM default with room for the
    # (b_pad, tile) f32 score tile and the resident ab operand.
    if ent_tile is None:
        ent_tile = 8192 if itemsize <= 2 else 4096
    tile = min(ent_tile, _round_up(num_ent, 128))
    tile = _round_up(tile, 128)
    grid = (pl.cdiv(num_ent, tile),)

    cost = pl.CostEstimate(
        flops=2 * b_pad * two_r * num_ent,
        transcendentals=0,
        bytes_accessed=(itemsize * (num_ent * two_r      # entity table scan
                                    + b_pad * two_r)     # fused lhs*rel*time
                        + 4 * b_pad * num_ent))           # f32 scores

    scores_pad = pl.pallas_call(
        _scores_kernel,
        out_shape=jax.ShapeDtypeStruct((b_pad, num_ent), jnp.float32),
        grid_spec=pltpu.PrefetchScalarGridSpec(
            num_scalar_prefetch=0,
            grid=grid,
            in_specs=[
                pl.BlockSpec((b_pad, two_r), lambda e: (0, 0)),   # resident
                pl.BlockSpec((tile, two_r), lambda e: (e, 0)),    # streamed
            ],
            out_specs=pl.BlockSpec((b_pad, tile), lambda e: (0, e)),
        ),
        compiler_params=pltpu.CompilerParams(
            dimension_semantics=("parallel",)),
        cost_estimate=cost,
    )(ab, ent_emb_stream)

    scores = scores_pad[:B, :]

    factors = {
        "n3": n3,
        "lambda3": ts_emb[:-1] if no_time_emb else ts_emb,
    }
    return scores, factors


def _reference_forward(x, ent_emb, rel_emb, ts_emb, rank, stream_dtype=None):
    """Plain-JAX reference.  If stream_dtype is given, quantize the streamed
    operands (ab, entity table) the same way the kernel does."""
    lhs = ent_emb[x[:, 0]]
    rel = rel_emb[x[:, 1]]
    rhs = ent_emb[x[:, 2]]
    tim = ts_emb[x[:, 3]]
    lre, lim = lhs[:, :rank], lhs[:, rank:]
    rre, rim = rel[:, :rank], rel[:, rank:]
    hre, him = rhs[:, :rank], rhs[:, rank:]
    tre, tmi = tim[:, :rank], tim[:, rank:]
    fr_re = rre * tre - rim * tmi
    fr_im = rim * tre + rre * tmi
    a = lre * fr_re - lim * fr_im
    b = lim * fr_re + lre * fr_im
    ab = jnp.concatenate([a, b], axis=-1)
    ent = ent_emb
    if stream_dtype is not None:
        ab = ab.astype(stream_dtype).astype(jnp.float32)
        ent = ent.astype(stream_dtype).astype(jnp.float32)
    scores = ab @ ent.T
    n3 = (jnp.sqrt(lre ** 2 + lim ** 2),
          jnp.sqrt(fr_re ** 2 + fr_im ** 2),
          jnp.sqrt(hre ** 2 + him ** 2))
    return scores, n3


if __name__ == "__main__":
    rank = 128
    num_ent, num_rel, num_ts = 256, 16, 32
    batch = 8
    init_size = 1e-2

    key = jax.random.PRNGKey(0)
    k_ent, k_rel, k_ts, k_x = jax.random.split(key, 4)

    # nn.Embedding default init: N(0, 1), then scaled by init_size
    ent_emb = jax.random.normal(k_ent, (num_ent, 2 * rank), jnp.float32) * init_size
    rel_emb = jax.random.normal(k_rel, (num_rel, 2 * rank), jnp.float32) * init_size
    ts_emb = jax.random.normal(k_ts, (num_ts, 2 * rank), jnp.float32) * init_size

    # bf16 copy of the entity table for the scan, created ONCE outside the
    # jitted forward (the f32 table stays the parameter of record).
    ent_emb_bf16 = ent_emb.astype(jnp.bfloat16)

    heads = jax.random.randint(k_x, (batch,), 0, num_ent)
    rels = jax.random.randint(jax.random.fold_in(k_x, 1), (batch,), 0, num_rel)
    tails = jax.random.randint(jax.random.fold_in(k_x, 2), (batch,), 0, num_ent)
    times = jax.random.randint(jax.random.fold_in(k_x, 3), (batch,), 0, num_ts)
    x = jnp.stack([heads, rels, tails, times], axis=1).astype(jnp.int32)

    scores, factors = tcomplex_forward(x, ent_emb, rel_emb, ts_emb,
                                       ent_emb_bf16, rank=rank)
    jax.block_until_ready(scores)
    jax.block_until_ready(factors)

    # 1) exact-semantics check: reference with identical bf16 quantization of
    #    the streamed operands (f32 accumulation in both).
    ref_q_scores, ref_n3 = _reference_forward(
        x, ent_emb, rel_emb, ts_emb, rank, stream_dtype=jnp.bfloat16)
    assert scores.shape == (batch, num_ent)
    assert jnp.allclose(scores, ref_q_scores, atol=1e-6, rtol=1e-4)

    # 2) loose check against the full-f32 reference (bounds bf16 quantization
    #    noise only).
    ref_f32_scores, _ = _reference_forward(x, ent_emb, rel_emb, ts_emb, rank)
    assert jnp.allclose(scores, ref_f32_scores, atol=1e-7, rtol=0.1)

    # 3) factors (pure f32 glue) match exactly-ish.
    for got, want in zip(factors["n3"], ref_n3):
        assert jnp.allclose(got, want, atol=1e-6, rtol=1e-5)
    assert factors["lambda3"].shape == (num_ts, 2 * rank)

    print("KERNEL_OK")
</pallas_src>

<mosaic_0001>
module attributes {stable_mosaic.version = 11 : i64} {
  func.func @_scores_kernel(%arg0: i32, %arg1: memref<16x256xbf16, #tpu.memory_space<vmem>>, %arg2: memref<256x256xbf16, #tpu.memory_space<vmem>>, %arg3: memref<16x256xf32, #tpu.memory_space<vmem>>) attributes {dimension_semantics = [#tpu.dimension_semantics<parallel>], iteration_bounds = array<i64: 1>, scalar_prefetch = 0 : i64, scratch_operands = 0 : i64, tpu.core_type = #tpu.core_type<tc>, window_params = [{pipeline_mode = #tpu.pipeline_mode<synchronous>, transform_indices = @transform_0, window_bounds = array<i64: 16, 256>}, {transform_indices = @transform_1, window_bounds = array<i64: 256, 256>}, {transform_indices = @transform_2, window_bounds = array<i64: 16, 256>}]} {
    %c0 = arith.constant 0 : index
    %c0_0 = arith.constant 0 : index
    %0 = vector.load %arg1[%c0, %c0_0] : memref<16x256xbf16, #tpu.memory_space<vmem>>, vector<16x256xbf16>
    %c0_1 = arith.constant 0 : index
    %c0_2 = arith.constant 0 : index
    %1 = vector.load %arg2[%c0_1, %c0_2] : memref<256x256xbf16, #tpu.memory_space<vmem>>, vector<256x256xbf16>
    %cst = arith.constant dense<0.000000e+00> : vector<16x256xf32>
    %2 = tpu.matmul %0, %1, %cst {dimension_numbers = #tpu.dot_dimension_numbers<[1], [1], [0], [0], [0, 0, 1, 0], [], []>} : vector<16x256xbf16>, vector<256x256xbf16>, vector<16x256xf32> -> vector<16x256xf32>
    %c0_3 = arith.constant 0 : index
    %c0_4 = arith.constant 0 : index
    %3 = vector.load %arg3[%c0_3, %c0_4] : memref<16x256xf32, #tpu.memory_space<vmem>>, vector<16x256xf32>
    tpu.vector_store %arg3[%c0_3, %c0_4], %2 {strides = array<i32>} : memref<16x256xf32, #tpu.memory_space<vmem>>, vector<16x256xf32>,
    return
  }
  func.func @transform_0(%arg0: i32) -> (i32, i32) {
    %c0_i32 = arith.constant 0 : i32
    %c0_i32_0 = arith.constant 0 : i32
    %c0_i32_1 = arith.constant 0 : i32
    return %c0_i32, %c0_i32_0 : i32, i32
  }
  func.func @transform_1(%arg0: i32) -> (i32, i32) {
    %c0_i32 = arith.constant 0 : i32
    %c0_i32_0 = arith.constant 0 : i32
    return %arg0, %c0_i32 : i32, i32
  }
  func.func @transform_2(%arg0: i32) -> (i32, i32) {
    %c0_i32 = arith.constant 0 : i32
    %c0_i32_0 = arith.constant 0 : i32
    return %c0_i32, %arg0 : i32, i32
  }
}

</mosaic_0001>

<llo_original>
// kernel: tcomplex_forward.1
$region0: #{tcomplex_forward.1}
  #allocation0 [shape = 'u32[]', space=smem, size = 0x4, offset = 0x4, fixed_abs, tag = 'smem constant byte address 0x4 - core index']
  #allocation1 [shape = 'u32[144,128]{1,0:T(1,128)}', space=vmem, size = 0x12000, scoped, tag = 'internal scratch']
  %s0 = inlined_call_operand.vmem [shape: bf16[16,256], index: 0, kind: input, shape index: {}]
  %s1 = inlined_call_operand.vmem [shape: bf16[256,256], index: 1, kind: input, shape index: {}]
  %s2 = inlined_call_operand.vmem [shape: f32[16,256], index: 2, kind: output, shape index: {}]
  %s3 = sld [smem:[#allocation0]]
  $region18: #{tcomplex_forward.1} parent=0
    _
  %s5 = ssub.s32 1, %s3
  %s6 = scalar_select 0, %s5, %s3
  // Predicated region
  $region2: #{tcomplex_forward.1} parent=0 // pred_check
    _
  $region3: #{tcomplex_forward.1} parent=0 // pred_check_branch
    %8 = sbr.rel (0) target = $region5
  $region4: #{tcomplex_forward.1} parent=0 // pred_region
    _
  $region5: #{tcomplex_forward.1} parent=0 // pred_fallthru
    _
  // Predicated region
  $region6: #{tcomplex_forward.1} parent=0 // pred_check
    _
  $region7: #{tcomplex_forward.1} parent=0 // pred_check_branch
    %10 = sbr.rel (0) target = $region9
  $region8: #{tcomplex_forward.1} parent=0 // pred_region
    _
  $region9: #{tcomplex_forward.1} parent=0 // pred_fallthru
    _
  %v11 = vld [vmem:[%s0] sm:$0xff]
  %v12 = vld [vmem:[%s0 + $0x8] sm:$0xff]
  %v13 = vld [vmem:[%s1] sm:$0xff]
  %v14 = vld [vmem:[%s1 + $0x8] sm:$0xff]
  %v15 = vld [vmem:[%s1 + $0x10] sm:$0xff]
  %v16 = vld [vmem:[%s1 + $0x18] sm:$0xff]
  %v17 = vld [vmem:[%s1 + $0x20] sm:$0xff]
  %v18 = vld [vmem:[%s1 + $0x28] sm:$0xff]
  %v19 = vld [vmem:[%s1 + $0x30] sm:$0xff]
  %v20 = vld [vmem:[%s1 + $0x38] sm:$0xff]
  %v21 = vld [vmem:[%s1 + $0x40] sm:$0xff]
  %v22 = vld [vmem:[%s1 + $0x48] sm:$0xff]
  %v23 = vld [vmem:[%s1 + $0x50] sm:$0xff]
  %v24 = vld [vmem:[%s1 + $0x58] sm:$0xff]
  %v25 = vld [vmem:[%s1 + $0x60] sm:$0xff]
  %v26 = vld [vmem:[%s1 + $0x68] sm:$0xff]
  %v27 = vld [vmem:[%s1 + $0x70] sm:$0xff]
  %v28 = vld [vmem:[%s1 + $0x78] sm:$0xff]
  %v29 = vld [vmem:[%s1 + $0x80] sm:$0xff]
  %v30 = vld [vmem:[%s1 + $0x88] sm:$0xff]
  %v31 = vld [vmem:[%s1 + $0x90] sm:$0xff]
  %v32 = vld [vmem:[%s1 + $0x98] sm:$0xff]
  %v33 = vld [vmem:[%s1 + $0xa0] sm:$0xff]
  %v34 = vld [vmem:[%s1 + $0xa8] sm:$0xff]
  %v35 = vld [vmem:[%s1 + $0xb0] sm:$0xff]
  %v36 = vld [vmem:[%s1 + $0xb8] sm:$0xff]
  %v37 = vld [vmem:[%s1 + $0xc0] sm:$0xff]
  %v38 = vld [vmem:[%s1 + $0xc8] sm:$0xff]
  %v39 = vld [vmem:[%s1 + $0xd0] sm:$0xff]
  %v40 = vld [vmem:[%s1 + $0xd8] sm:$0xff]
  %v41 = vld [vmem:[%s1 + $0xe0] sm:$0xff]
  %v42 = vld [vmem:[%s1 + $0xe8] sm:$0xff]
  %v43 = vld [vmem:[%s1 + $0xf0] sm:$0xff]
  %v44 = vld [vmem:[%s1 + $0xf8] sm:$0xff]
  %v47 = vunpack.c.l.b16 %v11
  %v48 = vunpack.c.h.b16 %v11
  %v49 = vunpack.c.l.b16 %v12
  %v50 = vunpack.c.h.b16 %v12
  %v51 = vpack.c.b16 %v49, %v47
  %v52 = vpack.c.b16 %v50, %v48
  %v87 = vunpack.c.l.b16 %v13
  %v88 = vunpack.c.h.b16 %v13
  %v89 = vunpack.c.l.b16 %v14
  %v90 = vunpack.c.h.b16 %v14
  %v91 = vunpack.c.l.b16 %v15
  %v92 = vunpack.c.h.b16 %v15
  %v93 = vunpack.c.l.b16 %v16
  %v94 = vunpack.c.h.b16 %v16
  %v95 = vunpack.c.l.b16 %v17
  %v96 = vunpack.c.h.b16 %v17
  %v97 = vunpack.c.l.b16 %v18
  %v98 = vunpack.c.h.b16 %v18
  %v99 = vunpack.c.l.b16 %v19
  %v100 = vunpack.c.h.b16 %v19
  %v101 = vunpack.c.l.b16 %v20
  %v102 = vunpack.c.h.b16 %v20
  %v103 = vunpack.c.l.b16 %v21
  %v104 = vunpack.c.h.b16 %v21
  %v105 = vunpack.c.l.b16 %v22
  %v106 = vunpack.c.h.b16 %v22
  %v107 = vunpack.c.l.b16 %v23
  %v108 = vunpack.c.h.b16 %v23
  %v109 = vunpack.c.l.b16 %v24
  %v110 = vunpack.c.h.b16 %v24
  %v111 = vunpack.c.l.b16 %v25
  %v112 = vunpack.c.h.b16 %v25
  %v113 = vunpack.c.l.b16 %v26
  %v114 = vunpack.c.h.b16 %v26
  %v115 = vunpack.c.l.b16 %v27
  %v116 = vunpack.c.h.b16 %v27
  %v117 = vunpack.c.l.b16 %v28
  %v118 = vunpack.c.h.b16 %v28
  %v119 = vunpack.c.l.b16 %v29
  %v120 = vunpack.c.h.b16 %v29
  %v121 = vunpack.c.l.b16 %v30
  %v122 = vunpack.c.h.b16 %v30
  %v123 = vunpack.c.l.b16 %v31
  %v124 = vunpack.c.h.b16 %v31
  %v125 = vunpack.c.l.b16 %v32
  %v126 = vunpack.c.h.b16 %v32
  %v127 = vunpack.c.l.b16 %v33
  %v128 = vunpack.c.h.b16 %v33
  %v129 = vunpack.c.l.b16 %v34
  %v130 = vunpack.c.h.b16 %v34
  %v131 = vunpack.c.l.b16 %v35
  %v132 = vunpack.c.h.b16 %v35
  %v133 = vunpack.c.l.b16 %v36
  %v134 = vunpack.c.h.b16 %v36
  %v135 = vunpack.c.l.b16 %v37
  %v136 = vunpack.c.h.b16 %v37
  %v137 = vunpack.c.l.b16 %v38
  %v138 = vunpack.c.h.b16 %v38
  %v139 = vunpack.c.l.b16 %v39
  %v140 = vunpack.c.h.b16 %v39
  %v141 = vunpack.c.l.b16 %v40
  %v142 = vunpack.c.h.b16 %v40
  %v143 = vunpack.c.l.b16 %v41
  %v144 = vunpack.c.h.b16 %v41
  %v145 = vunpack.c.l.b16 %v42
  %v146 = vunpack.c.h.b16 %v42
  %v147 = vunpack.c.l.b16 %v43
  %v148 = vunpack.c.h.b16 %v43
  %v149 = vunpack.c.l.b16 %v44
  %v150 = vunpack.c.h.b16 %v44
  %v151 = vpack.c.b16 %v89, %v87
  %v152 = vpack.c.b16 %v90, %v88
  %v153 = vpack.c.b16 %v93, %v91
  %v154 = vpack.c.b16 %v94, %v92
  %v155 = vpack.c.b16 %v97, %v95
  %v156 = vpack.c.b16 %v98, %v96
  %v157 = vpack.c.b16 %v101, %v99
  %v158 = vpack.c.b16 %v102, %v100
  %v159 = vpack.c.b16 %v105, %v103
  %v160 = vpack.c.b16 %v106, %v104
  %v161 = vpack.c.b16 %v109, %v107
  %v162 = vpack.c.b16 %v110, %v108
  %v163 = vpack.c.b16 %v113, %v111
  %v164 = vpack.c.b16 %v114, %v112
  %v165 = vpack.c.b16 %v117, %v115
  %v166 = vpack.c.b16 %v118, %v116
  %v167 = vpack.c.b16 %v121, %v119
  %v168 = vpack.c.b16 %v122, %v120
  %v169 = vpack.c.b16 %v125, %v123
  %v170 = vpack.c.b16 %v126, %v124
  %v171 = vpack.c.b16 %v129, %v127
  %v172 = vpack.c.b16 %v130, %v128
  %v173 = vpack.c.b16 %v133, %v131
  %v174 = vpack.c.b16 %v134, %v132
  %v175 = vpack.c.b16 %v137, %v135
  %v176 = vpack.c.b16 %v138, %v136
  %v177 = vpack.c.b16 %v141, %v139
  %v178 = vpack.c.b16 %v142, %v140
  %v179 = vpack.c.b16 %v145, %v143
  %v180 = vpack.c.b16 %v146, %v144
  %v181 = vpack.c.b16 %v149, %v147
  %v182 = vpack.c.b16 %v150, %v148
  %215 = vmatprep.subr.bf16.mxu0 %v152
  %216 = vmatpush1.bf16.xpose.msra.mxu0 %v151
  %217 = vmatprep.subr.bf16.mxu0 %v154
  %218 = vmatpush1.bf16.xpose.msra.mxu0 %v153
  %219 = vmatprep.subr.bf16.mxu0 %v156
  %220 = vmatpush1.bf16.xpose.msra.mxu0 %v155
  %221 = vmatprep.subr.bf16.mxu0 %v158
  %222 = vmatpush1.bf16.xpose.msra.mxu0 %v157
  %223 = vmatprep.subr.bf16.mxu0 %v160
  %224 = vmatpush1.bf16.xpose.msra.mxu0 %v159
  %225 = vmatprep.subr.bf16.mxu0 %v162
  %226 = vmatpush1.bf16.xpose.msra.mxu0 %v161
  %227 = vmatprep.subr.bf16.mxu0 %v164
  %228 = vmatpush1.bf16.xpose.msra.mxu0 %v163
  %229 = vmatprep.subr.bf16.mxu0 %v166
  %230 = vmatpush1.bf16.xpose.msra.mxu0 %v165
  %231 = vmatprep.subr.bf16.mxu0 %v168
  %232 = vmatpush1.bf16.xpose.msra.mxu0 %v167
  %233 = vmatprep.subr.bf16.mxu0 %v170
  %234 = vmatpush1.bf16.xpose.msra.mxu0 %v169
  %235 = vmatprep.subr.bf16.mxu0 %v172
  %236 = vmatpush1.bf16.xpose.msra.mxu0 %v171
  %237 = vmatprep.subr.bf16.mxu0 %v174
  %238 = vmatpush1.bf16.xpose.msra.mxu0 %v173
  %239 = vmatprep.subr.bf16.mxu0 %v176
  %240 = vmatpush1.bf16.xpose.msra.mxu0 %v175
  %241 = vmatprep.subr.bf16.mxu0 %v178
  %242 = vmatpush1.bf16.xpose.msra.mxu0 %v177
  %243 = vmatprep.subr.bf16.mxu0 %v180
  %244 = vmatpush1.bf16.xpose.msra.mxu0 %v179
  %245 = vmatprep.subr.bf16.mxu0 %v182
  %246 = vmatpush1.bf16.xpose.msra.mxu0 %v181
  %247 = vmatprep.mubr.bf16.mxu0 %v52
  %248 = vmatmul.mubr.bf16.gmra.mrb[0].mxu0 %v51
  %v249 = vpop.f32.mrb[0].mxu0
  %v250 = vadd.f32 0.0, %v249
  %v251 = vpop.f32.mrb[0].mxu0
  %v252 = vadd.f32 0.0, %v251
  %v253 = vpop.f32.mrb[0].mxu0
  %v254 = vadd.f32 0.0, %v253
  %v255 = vpop.f32.mrb[0].mxu0
  %v256 = vadd.f32 0.0, %v255
  %257 = vdwg.mxu0
  %258 = vst [vmem:[%s2] sm:$0xff] %v250
  %259 = vst [vmem:[%s2 + $0x8] sm:$0xff] %v252
  %260 = vst [vmem:[%s2 + $0x10] sm:$0xff] %v254
  %261 = vst [vmem:[%s2 + $0x18] sm:$0xff] %v256
  // Predicated region
  $region10: #{tcomplex_forward.1} parent=0 // pred_check
    _
  $region11: #{tcomplex_forward.1} parent=0 // pred_check_branch
    %263 = sbr.rel (0) target = $region13
  $region12: #{tcomplex_forward.1} parent=0 // pred_region
    _
  $region13: #{tcomplex_forward.1} parent=0 // pred_fallthru
    _
  // Predicated region
  $region14: #{tcomplex_forward.1} parent=0 // pred_check
    _
  $region15: #{tcomplex_forward.1} parent=0 // pred_check_branch
    %265 = sbr.rel (0) target = $region17
  $region16: #{tcomplex_forward.1} parent=0 // pred_region
    _
  $region17: #{tcomplex_forward.1} parent=0 // pred_fallthru
    _

</llo_original>
